<compile_context>
chip_gen: v7x
topology: tpu7x:2x2x1
jax: 0.10.0
libtpu: 0.0.40
codegen_flags: <defaults>
</compile_context>

<pallas_src>
import jax
import jax.numpy as jnp
import numpy as np
from jax import lax
from jax.experimental import pallas as pl
from jax.experimental.pallas import tpu as pltpu


def _vmem_capacity_bytes():
    """Per-TensorCore VMEM capacity; conservative fallback if the query fails."""
    try:
        return int(pltpu.get_tpu_info().vmem_capacity_bytes)
    except Exception:
        return 64 << 20  # v7x per-TC size; safe lower bound for v5e/v6e too


def make_hybrid_loss(B, H, W, bce_weight=1.0, mse_weight=0.0, kld_weight=0.1,
                     dtype=jnp.float32, max_block_bytes=None, num_cores=2):
    N = H * W
    itembytes = jnp.dtype(dtype).itemsize
    sub = max(8, 32 // itembytes)            # sublane granularity: 8 f32, 16 bf16, 32 int8

    vmem_cap = _vmem_capacity_bytes()
    if max_block_bytes is None:
        # 2 inputs x 2 pipeline buffers; keep the footprint around 55% of VMEM.
        max_block_bytes = max(1 << 20, int(vmem_cap * 0.55) // 4)
    vmem_limit = max(32 << 20, min(int(vmem_cap * 0.75), 100 << 20))

    # Rows (samples) per block.
    max_tb = max(1, max_block_bytes // (N * itembytes))
    if B <= max_tb:
        TB = B                               # full batch dim -> always a legal block dim
    else:
        TB = max(sub, (max_tb // sub) * sub)
    total_blocks = -(-B // TB)

    # Core split (helps on v7x; degenerates to a sequential loop on 1-TC chips).
    NC = max(1, min(num_cores, total_blocks))
    spc = -(-total_blocks // NC)             # grid steps per core
    needs_row_mask = (NC * spc * TB != B)

    inv_n_total = 1.0 / float(B * H * W)     # BCE / MSE mean over original elements
    inv_batch = 1.0 / float(B)               # KLDiv 'batchmean'

    active = []
    if bce_weight > 0:
        active.append("bce")
    if mse_weight > 0:
        active.append("mse")
    if kld_weight > 0:
        active.append("kld")

    def kernel(pred_ref, target_ref, out_ref, *accs):
        acc = dict(zip(active, accs))
        c = pl.program_id(0)                 # core (parallel) axis
        s = pl.program_id(1)                 # step (arbitrary / reduction) axis

        @pl.when(s == 0)
        def _init():
            for a in accs:
                a[...] = jnp.zeros_like(a)

        p = pred_ref[...].astype(jnp.float32)     # (TB, N)
        t = target_ref[...].astype(jnp.float32)   # (TB, N)

        if needs_row_mask:
            row0 = (c * spc + s) * TB
            row_ids = row0 + lax.broadcasted_iota(jnp.int32, (TB, 1), 0)
            row_ok = row_ids < B                  # (TB, 1) bool

            def rmask(x):                         # zero contributions of OOB rows
                return jnp.where(row_ok, x, 0.0)
        else:
            def rmask(x):
                return x

        # ---- BCE (torch.nn.BCELoss semantics, logs clamped at -100) ----
        if "bce" in acc:
            log_p = jnp.maximum(jnp.log(p), -100.0)
            log_1mp = jnp.maximum(jnp.log(1.0 - p), -100.0)
            bce = -(log_1mp + t * (log_p - log_1mp))     # == -(t*log_p + (1-t)*log_1mp)
            acc["bce"][...] += rmask(jnp.sum(bce, axis=1, keepdims=True))

        # ---- MSE ----
        if "mse" in acc:
            d = p - t
            acc["mse"][...] += rmask(jnp.sum(d * d, axis=1, keepdims=True))

        # ---- KLDiv on per-sample spatial distributions, fully factored & exact:
        #   log(p/(S_p+eps) + eps) = log(p + eps*(S_p+eps)) - log(S_p+eps)
        #   KL_row = [ S1 + t_sum*(log(S_p+eps) - log(S_t+eps)) ] / (S_t+eps)
        #   S1     = sum_{t>0} t * (log t - log(p + eps*(S_p+eps)))
        if "kld" in acc:
            p_sum = jnp.sum(p, axis=1, keepdims=True)    # (TB, 1)
            t_sum = jnp.sum(t, axis=1, keepdims=True)    # (TB, 1)
            log_p_kl = jnp.log(p + 1e-10 * (p_sum + 1e-10))
            log_t = jnp.log(t)                           # -inf at t==0, masked below
            s1 = jnp.sum(jnp.where(t > 0.0, t * (log_t - log_p_kl), 0.0),
                         axis=1, keepdims=True)
            num = s1 + t_sum * (jnp.log(p_sum + 1e-10) - jnp.log(t_sum + 1e-10))
            acc["kld"][...] += rmask(num / (t_sum + 1e-10))

        @pl.when(s == pl.num_programs(1) - 1)
        def _finalize():
            loss = jnp.float32(0.0)
            if "bce" in acc:
                loss = loss + (bce_weight * inv_n_total) * jnp.sum(acc["bce"][...])
            if "mse" in acc:
                loss = loss + (mse_weight * inv_n_total) * jnp.sum(acc["mse"][...])
            if "kld" in acc:
                loss = loss + (kld_weight * inv_batch) * jnp.sum(acc["kld"][...])
            out_ref[...] = jnp.broadcast_to(loss, out_ref.shape)

    # Clamp the block index so a core's overhang steps never request a fully
    # out-of-bounds block (their rows are zeroed by the in-kernel row mask anyway).
    if NC * spc == total_blocks:
        def in_map(c, s):
            return (c * spc + s, 0)
    else:
        def in_map(c, s):
            return (jnp.minimum(c * spc + s, total_blocks - 1), 0)

    grid_spec = pltpu.PrefetchScalarGridSpec(
        num_scalar_prefetch=0,
        grid=(NC, spc),
        in_specs=[
            pl.BlockSpec((TB, N), in_map),
            pl.BlockSpec((TB, N), in_map),
        ],
        out_specs=pl.BlockSpec((1, 8, 128), lambda c, s: (c, 0, 0)),
        scratch_shapes=[pltpu.VMEM((TB, 1), jnp.float32) for _ in active],
    )

    pallas_fn = pl.pallas_call(
        kernel,
        out_shape=jax.ShapeDtypeStruct((NC, 8, 128), jnp.float32),
        grid_spec=grid_spec,
        compiler_params=pltpu.CompilerParams(
            dimension_semantics=("parallel", "arbitrary"),
            vmem_limit_bytes=vmem_limit,
        ),
    )

    def hybrid_loss(pred, target):
        # pred/target: (B, H, W); f32 or bf16 stream through the DMA unchanged.
        p2 = pred.reshape(B, N).astype(dtype)
        t2 = target.reshape(B, N).astype(dtype)
        parts = pallas_fn(p2, t2)            # (NC, 8, 128): per-core partial loss (splat)
        return jnp.sum(parts[:, 0, 0])

    return hybrid_loss


def hybrid_loss_ref(pred, target, bce_weight=1.0, mse_weight=0.0, kld_weight=0.1):
    """Pure-JAX reference mirroring the PyTorch HybridLoss.forward."""
    loss = 0.0
    if bce_weight > 0:
        log_p = jnp.maximum(jnp.log(pred), -100.0)
        log_1mp = jnp.maximum(jnp.log(1.0 - pred), -100.0)
        loss += bce_weight * jnp.mean(-(target * log_p + (1.0 - target) * log_1mp))
    if mse_weight > 0:
        loss += mse_weight * jnp.mean((pred - target) ** 2)
    if kld_weight > 0:
        p_dist = pred / (jnp.sum(pred, axis=(1, 2), keepdims=True) + 1e-10)
        t_dist = target / (jnp.sum(target, axis=(1, 2), keepdims=True) + 1e-10)
        log_p_dist = jnp.log(p_dist + 1e-10)
        kl = jnp.where(t_dist > 0, t_dist * (jnp.log(t_dist) - log_p_dist), 0.0)
        loss += kld_weight * jnp.sum(kl) / pred.shape[0]
    return loss


if __name__ == "__main__":
    B, H, W = 2, 16, 16
    key = jax.random.PRNGKey(0)
    k1, k2 = jax.random.split(key)
    # pred in (0,1) (BCE requires probabilities), target heatmap in [0,1]
    pred = jax.nn.sigmoid(jax.random.normal(k1, (B, H, W), dtype=jnp.float32))
    target = jax.random.uniform(k2, (B, H, W), dtype=jnp.float32)

    loss_fn = make_hybrid_loss(B, H, W, bce_weight=1.0, mse_weight=0.0, kld_weight=0.1)
    out = loss_fn(pred, target)
    jax.block_until_ready(out)

    ref = hybrid_loss_ref(pred, target)
    np.testing.assert_allclose(np.asarray(out), np.asarray(ref), rtol=1e-4, atol=1e-5)

    print("KERNEL_OK")
</pallas_src>

<mosaic_0001>
module attributes {stable_mosaic.version = 11 : i64} {
  func.func @kernel(%arg0: i32, %arg1: i32, %arg2: memref<2x256xf32, #tpu.memory_space<vmem>>, %arg3: memref<2x256xf32, #tpu.memory_space<vmem>>, %arg4: memref<1x8x128xf32, #tpu.memory_space<vmem>>, %arg5: memref<2x1xf32, #tpu.memory_space<vmem>>, %arg6: memref<2x1xf32, #tpu.memory_space<vmem>>) attributes {dimension_semantics = [#tpu.dimension_semantics<parallel>, #tpu.dimension_semantics<arbitrary>], iteration_bounds = array<i64: 1, 1>, scalar_prefetch = 0 : i64, scratch_operands = 2 : i64, tpu.core_type = #tpu.core_type<tc>, window_params = [{transform_indices = @transform_0, window_bounds = array<i64: 2, 256>}, {transform_indices = @transform_1, window_bounds = array<i64: 2, 256>}, {transform_indices = @transform_2, window_bounds = array<i64: 1, 8, 128>}]} {
    %c0_i32 = arith.constant 0 : i32
    %0 = arith.cmpi eq, %arg1, %c0_i32 : i32
    %1 = arith.extui %0 : i1 to i32
    %c0_i32_0 = arith.constant 0 : i32
    %2 = arith.cmpi ne, %1, %c0_i32_0 : i32
    scf.if %2 {
      %cst_28 = arith.constant 0.000000e+00 : f32
      %61 = vector.broadcast %cst_28 : f32 to vector<2x1xf32>
      %c0_29 = arith.constant 0 : index
      %c0_30 = arith.constant 0 : index
      %62 = vector.load %arg5[%c0_29, %c0_30] : memref<2x1xf32, #tpu.memory_space<vmem>>, vector<2x1xf32>
      tpu.vector_store %arg5[%c0_29, %c0_30], %61 {strides = array<i32>} : memref<2x1xf32, #tpu.memory_space<vmem>>, vector<2x1xf32>,
      %cst_31 = arith.constant 0.000000e+00 : f32
      %63 = vector.broadcast %cst_31 : f32 to vector<2x1xf32>
      %c0_32 = arith.constant 0 : index
      %c0_33 = arith.constant 0 : index
      %64 = vector.load %arg6[%c0_32, %c0_33] : memref<2x1xf32, #tpu.memory_space<vmem>>, vector<2x1xf32>
      tpu.vector_store %arg6[%c0_32, %c0_33], %63 {strides = array<i32>} : memref<2x1xf32, #tpu.memory_space<vmem>>, vector<2x1xf32>,
    } else {
    }
    %c0 = arith.constant 0 : index
    %c0_1 = arith.constant 0 : index
    %3 = vector.load %arg2[%c0, %c0_1] : memref<2x256xf32, #tpu.memory_space<vmem>>, vector<2x256xf32>
    %c0_2 = arith.constant 0 : index
    %c0_3 = arith.constant 0 : index
    %4 = vector.load %arg3[%c0_2, %c0_3] : memref<2x256xf32, #tpu.memory_space<vmem>>, vector<2x256xf32>
    %5 = math.log %3 : vector<2x256xf32>
    %cst = arith.constant -1.000000e+02 : f32
    %6 = vector.broadcast %cst : f32 to vector<2x256xf32>
    %7 = arith.maximumf %5, %6 : vector<2x256xf32>
    %cst_4 = arith.constant 1.000000e+00 : f32
    %8 = vector.broadcast %cst_4 : f32 to vector<2x256xf32>
    %9 = arith.subf %8, %3 : vector<2x256xf32>
    %10 = math.log %9 : vector<2x256xf32>
    %cst_5 = arith.constant -1.000000e+02 : f32
    %11 = vector.broadcast %cst_5 : f32 to vector<2x256xf32>
    %12 = arith.maximumf %10, %11 : vector<2x256xf32>
    %13 = arith.subf %7, %12 : vector<2x256xf32>
    %14 = arith.mulf %4, %13 : vector<2x256xf32>
    %15 = arith.addf %12, %14 : vector<2x256xf32>
    %cst_6 = arith.constant 0.000000e+00 : f32
    %16 = vector.broadcast %cst_6 : f32 to vector<2x256xf32>
    %17 = arith.subf %16, %15 : vector<2x256xf32>
    %c0_7 = arith.constant 0 : index
    %c0_8 = arith.constant 0 : index
    %18 = vector.load %arg5[%c0_7, %c0_8] : memref<2x1xf32, #tpu.memory_space<vmem>>, vector<2x1xf32>
    %cst_9 = arith.constant dense<0.000000e+00> : vector<2xf32>
    %19 = vector.multi_reduction <add>, %17, %cst_9 [1] : vector<2x256xf32> to vector<2xf32>
    %20 = vector.shape_cast %19 : vector<2xf32> to vector<2x1xf32>
    %21 = arith.addf %18, %20 : vector<2x1xf32>
    %c0_10 = arith.constant 0 : index
    %c0_11 = arith.constant 0 : index
    %22 = vector.load %arg5[%c0_10, %c0_11] : memref<2x1xf32, #tpu.memory_space<vmem>>, vector<2x1xf32>
    tpu.vector_store %arg5[%c0_10, %c0_11], %21 {strides = array<i32>} : memref<2x1xf32, #tpu.memory_space<vmem>>, vector<2x1xf32>,
    %cst_12 = arith.constant dense<0.000000e+00> : vector<2xf32>
    %23 = vector.multi_reduction <add>, %3, %cst_12 [1] : vector<2x256xf32> to vector<2xf32>
    %24 = vector.shape_cast %23 : vector<2xf32> to vector<2x1xf32>
    %cst_13 = arith.constant dense<0.000000e+00> : vector<2xf32>
    %25 = vector.multi_reduction <add>, %4, %cst_13 [1] : vector<2x256xf32> to vector<2xf32>
    %26 = vector.shape_cast %25 : vector<2xf32> to vector<2x1xf32>
    %cst_14 = arith.constant 1.000000e-10 : f32
    %27 = vector.broadcast %cst_14 : f32 to vector<2x1xf32>
    %28 = arith.addf %24, %27 : vector<2x1xf32>
    %cst_15 = arith.constant 1.000000e-10 : f32
    %29 = vector.broadcast %cst_15 : f32 to vector<2x1xf32>
    %30 = arith.mulf %29, %28 : vector<2x1xf32>
    %31 = vector.broadcast %30 : vector<2x1xf32> to vector<2x256xf32>
    %32 = arith.addf %3, %31 : vector<2x256xf32>
    %33 = math.log %32 : vector<2x256xf32>
    %34 = math.log %4 : vector<2x256xf32>
    %cst_16 = arith.constant 0.000000e+00 : f32
    %35 = vector.broadcast %cst_16 : f32 to vector<2x256xf32>
    %36 = arith.cmpf ogt, %4, %35 : vector<2x256xf32>
    %37 = arith.subf %34, %33 : vector<2x256xf32>
    %38 = arith.mulf %4, %37 : vector<2x256xf32>
    %cst_17 = arith.constant 0.000000e+00 : f32
    %39 = vector.broadcast %cst_17 : f32 to vector<2x256xf32>
    %40 = arith.select %36, %38, %39 : vector<2x256xi1>, vector<2x256xf32>
    %cst_18 = arith.constant dense<0.000000e+00> : vector<2xf32>
    %41 = vector.multi_reduction <add>, %40, %cst_18 [1] : vector<2x256xf32> to vector<2xf32>
    %42 = vector.shape_cast %41 : vector<2xf32> to vector<2x1xf32>
    %cst_19 = arith.constant 1.000000e-10 : f32
    %43 = vector.broadcast %cst_19 : f32 to vector<2x1xf32>
    %44 = arith.addf %24, %43 : vector<2x1xf32>
    %45 = math.log %44 : vector<2x1xf32>
    %cst_20 = arith.constant 1.000000e-10 : f32
    %46 = vector.broadcast %cst_20 : f32 to vector<2x1xf32>
    %47 = arith.addf %26, %46 : vector<2x1xf32>
    %48 = math.log %47 : vector<2x1xf32>
    %49 = arith.subf %45, %48 : vector<2x1xf32>
    %50 = arith.mulf %26, %49 : vector<2x1xf32>
    %51 = arith.addf %42, %50 : vector<2x1xf32>
    %c0_21 = arith.constant 0 : index
    %c0_22 = arith.constant 0 : index
    %52 = vector.load %arg6[%c0_21, %c0_22] : memref<2x1xf32, #tpu.memory_space<vmem>>, vector<2x1xf32>
    %cst_23 = arith.constant 1.000000e-10 : f32
    %53 = vector.broadcast %cst_23 : f32 to vector<2x1xf32>
    %54 = arith.addf %26, %53 : vector<2x1xf32>
    %55 = arith.divf %51, %54 : vector<2x1xf32>
    %56 = arith.addf %52, %55 : vector<2x1xf32>
    %c0_24 = arith.constant 0 : index
    %c0_25 = arith.constant 0 : index
    %57 = vector.load %arg6[%c0_24, %c0_25] : memref<2x1xf32, #tpu.memory_space<vmem>>, vector<2x1xf32>
    tpu.vector_store %arg6[%c0_24, %c0_25], %56 {strides = array<i32>} : memref<2x1xf32, #tpu.memory_space<vmem>>, vector<2x1xf32>,
    %c0_i32_26 = arith.constant 0 : i32
    %58 = arith.cmpi eq, %arg1, %c0_i32_26 : i32
    %59 = arith.extui %58 : i1 to i32
    %c0_i32_27 = arith.constant 0 : i32
    %60 = arith.cmpi ne, %59, %c0_i32_27 : i32
    scf.if %60 {
      %c0_28 = arith.constant 0 : index
      %c0_29 = arith.constant 0 : index
      %61 = vector.load %arg5[%c0_28, %c0_29] : memref<2x1xf32, #tpu.memory_space<vmem>>, vector<2x1xf32>
      %62 = vector.shape_cast %61 : vector<2x1xf32> to vector<1x2x1xf32>
      %cst_30 = arith.constant dense<0.000000e+00> : vector<1xf32>
      %63 = vector.multi_reduction <add>, %62, %cst_30 [1, 2] : vector<1x2x1xf32> to vector<1xf32>
      %64 = vector.shape_cast %63 : vector<1xf32> to vector<1x1x1xf32>
      %65 = vector.extract %64[0, 0, 0] : f32 from vector<1x1x1xf32>
      %cst_31 = arith.constant 0.001953125 : f32
      %66 = arith.mulf %cst_31, %65 : f32
      %cst_32 = arith.constant 0.000000e+00 : f32
      %67 = arith.addf %cst_32, %66 : f32
      %c0_33 = arith.constant 0 : index
      %c0_34 = arith.constant 0 : index
      %68 = vector.load %arg6[%c0_33, %c0_34] : memref<2x1xf32, #tpu.memory_space<vmem>>, vector<2x1xf32>
      %69 = vector.shape_cast %68 : vector<2x1xf32> to vector<1x2x1xf32>
      %cst_35 = arith.constant dense<0.000000e+00> : vector<1xf32>
      %70 = vector.multi_reduction <add>, %69, %cst_35 [1, 2] : vector<1x2x1xf32> to vector<1xf32>
      %71 = vector.shape_cast %70 : vector<1xf32> to vector<1x1x1xf32>
      %72 = vector.extract %71[0, 0, 0] : f32 from vector<1x1x1xf32>
      %cst_36 = arith.constant 5.000000e-02 : f32
      %73 = arith.mulf %cst_36, %72 : f32
      %74 = arith.addf %67, %73 : f32
      %75 = vector.broadcast %74 : f32 to vector<1x8x128xf32>
      %c0_37 = arith.constant 0 : index
      %c0_38 = arith.constant 0 : index
      %c0_39 = arith.constant 0 : index
      %76 = vector.load %arg4[%c0_37, %c0_38, %c0_39] : memref<1x8x128xf32, #tpu.memory_space<vmem>>, vector<1x8x128xf32>
      tpu.vector_store %arg4[%c0_37, %c0_38, %c0_39], %75 {strides = array<i32>} : memref<1x8x128xf32, #tpu.memory_space<vmem>>, vector<1x8x128xf32>,
    } else {
    }
    return
  }
  func.func @transform_0(%arg0: i32, %arg1: i32) -> (i32, i32) {
    %c1_i32 = arith.constant 1 : i32
    %0 = arith.muli %arg0, %c1_i32 : i32
    %1 = arith.addi %0, %arg1 : i32
    %c0_i32 = arith.constant 0 : i32
    %c0_i32_0 = arith.constant 0 : i32
    return %1, %c0_i32 : i32, i32
  }
  func.func @transform_1(%arg0: i32, %arg1: i32) -> (i32, i32) {
    %c1_i32 = arith.constant 1 : i32
    %0 = arith.muli %arg0, %c1_i32 : i32
    %1 = arith.addi %0, %arg1 : i32
    %c0_i32 = arith.constant 0 : i32
    %c0_i32_0 = arith.constant 0 : i32
    return %1, %c0_i32 : i32, i32
  }
  func.func @transform_2(%arg0: i32, %arg1: i32) -> (i32, i32, i32) {
    %c0_i32 = arith.constant 0 : i32
    %c0_i32_0 = arith.constant 0 : i32
    %c0_i32_1 = arith.constant 0 : i32
    return %arg0, %c0_i32, %c0_i32_0 : i32, i32, i32
  }
}

</mosaic_0001>

<llo_original>
// kernel: tpu_custom_call.1
$region0: #{tpu_custom_call.1}
  #allocation0 [shape = 'u32[]', space=smem, size = 0x4, offset = 0x4, fixed_abs, tag = 'smem constant byte address 0x4 - core index']
  #allocation1 [shape = 'u32[144,128]{1,0:T(1,128)}', space=vmem, size = 0x12000, scoped, tag = 'internal scratch']
  #allocation2 [shape = 'f32[2,1]{1,0:T(2,128)}', space=vmem, size = 0x400, scoped, tag = 'scratch operand']
  #allocation3 [shape = 'f32[2,1]{1,0:T(2,128)}', space=vmem, size = 0x400, scoped, tag = 'scratch operand']
  %s0 = inlined_call_operand.hbm [shape: f32[2,256], index: 0, kind: input, shape index: {}]
  %s1 = inlined_call_operand.hbm [shape: f32[2,256], index: 1, kind: input, shape index: {}]
  %s2 = inlined_call_operand.hbm [shape: f32[1,8,128], index: 2, kind: output, shape index: {}]
  %s3 = sld [smem:[#allocation0]]
  $region34: #{tpu_custom_call.1} parent=0
    _
  %s5 = ssub.s32 1, %s3
  %s6 = scalar_select 0, %s5, %s3
  $region1: #{tpu_custom_call.1} parent=0
    #allocation4 [shape = 'u8[2048]{0}', space=vmem, size = 0x800, scoped, tag = 'input window, operand 0, single buffered']
    #allocation5 [shape = 's32[1]{0}', space=sflag, size = 0x4, scoped, tag = 'scoped memory for tpu_custom_call.1']
    #allocation6 [shape = 's32[1]{0}', space=sflag, size = 0x4, scoped, tag = 'scoped memory for tpu_custom_call.1']
    #allocation7 [shape = 'u8[2048]{0}', space=vmem, size = 0x800, scoped, tag = 'input window, operand 1, single buffered']
    #allocation8 [shape = 's32[1]{0}', space=sflag, size = 0x4, scoped, tag = 'scoped memory for tpu_custom_call.1']
    #allocation9 [shape = 'u8[4096]{0}', space=vmem, size = 0x1000, scoped, tag = 'output window, operand 0, single buffered']
    %7 = vsyncpa [#allocation5], 0
    %8 = vsyncpa [#allocation8], 0
    %9 = vsyncpa [#allocation6], 0
    // Predicated region
    $region2: #{tpu_custom_call.1} parent=1 // pred_check
      _
    $region3: #{tpu_custom_call.1} parent=1 // pred_check_branch
      %11 = sbr.rel (0) target = $region5
    $region4: #{tpu_custom_call.1} parent=1 // pred_region
      %s12 = sadd.s32 0, 0
      %s14 = ssub.s32 64, 64
      %15 = vsyncadd [#allocation5], %s14
      %s16 = smul.addr %s12, 2
      %s17 = smul.addr %s16, 32
      %s18 = scalar_lea.hbm %s0, %s17
      %s20 = sshll.u32 [#allocation4], 4
      %s21 = int_to_ptr.vmem [resolvable:$true] %s20
      %23 = dma.hbm_to_vmem [thread:$0]  %s18, 64, %s21, [#allocation5]
    $region5: #{tpu_custom_call.1} parent=1 // pred_fallthru
      _
    // Predicated region
    $region6: #{tpu_custom_call.1} parent=1 // pred_check
      _
    $region7: #{tpu_custom_call.1} parent=1 // pred_check_branch
      %25 = sbr.rel (0) target = $region9
    $region8: #{tpu_custom_call.1} parent=1 // pred_region
      %s26 = sadd.s32 0, 0
      %s28 = ssub.s32 64, 64
      %29 = vsyncadd [#allocation8], %s28
      %s30 = smul.addr %s26, 2
      %s31 = smul.addr %s30, 32
      %s32 = scalar_lea.hbm %s1, %s31
      %s34 = sshll.u32 [#allocation7], 4
      %s35 = int_to_ptr.vmem [resolvable:$true] %s34
      %37 = dma.hbm_to_vmem [thread:$0]  %s32, 64, %s35, [#allocation8]
    $region9: #{tpu_custom_call.1} parent=1 // pred_fallthru
      _
    // Predicated region
    $region10: #{tpu_custom_call.1} parent=1 // pred_check
      _
    $region11: #{tpu_custom_call.1} parent=1 // pred_check_branch
      %39 = sbr.rel (0) target = $region13
    $region12: #{tpu_custom_call.1} parent=1 // pred_region
      %40 = dma.done [#allocation5], 64
    $region13: #{tpu_custom_call.1} parent=1 // pred_fallthru
      _
    // Predicated region
    $region14: #{tpu_custom_call.1} parent=1 // pred_check
      _
    $region15: #{tpu_custom_call.1} parent=1 // pred_check_branch
      %42 = sbr.rel (0) target = $region17
    $region16: #{tpu_custom_call.1} parent=1 // pred_region
      %43 = dma.done [#allocation8], 64
    $region17: #{tpu_custom_call.1} parent=1 // pred_fallthru
      _
    %s44 = sadd.s32 0, 0
    %s45 = sadd.s32 0, 0
    %p46 = scmp.eq.s32.totalorder 0, 0
    // Predicated region
    $region18: #{tpu_custom_call.1} parent=1 // pred_check
      %p47 = pneg %p46
    $region19: #{tpu_custom_call.1} parent=1 // pred_check_branch
      %49 = sbr.rel (%p47) target = $region21
    $region20: #{tpu_custom_call.1} parent=1 // pred_region
      %vm50 = vcmask 1024
      %51 = vst.msk [vmem:[#allocation2] sm:$0x3] %vm50, 0.0
      %52 = vst.msk [vmem:[#allocation3] sm:$0x3] %vm50, 0.0
    $region21: #{tpu_custom_call.1} parent=1 // pred_fallthru
      _
    %v53 = vld [vmem:[#allocation4] sm:$0xf]
    %v54 = vld [vmem:[#allocation7] sm:$0xf]
    %v55 = vlog2.pop %v53
    %v56 = vmul.f32 %v55, 0.6931472
    %v57 = vmax.f32 %v56, -100.0
    %v58 = vsub.f32 1.0, %v53
    %v59 = vlog2.pop %v58
    %v60 = vmul.f32 %v59, 0.6931472
    %v61 = vmax.f32 %v60, -100.0
    %v62 = vsub.f32 %v57, %v61
    %v63 = vmul.f32 %v54, %v62
    %v64 = vadd.f32 %v61, %v63
    %v65 = vsub.f32 0.0, %v64
    %v66 = vld [vmem:[#allocation2] sm:$0x3]
    %v69 = vunpack.c.l.s4 1983009808
    %v70 = vunpack.c.0.s8 %v69
    %v71 = vlaneseq
    %v72 = vshrl.u32 %v71, 7
    %v73 = vsub.s32 %v70, %v72
    %v74 = vrot.slane %v65, %v73
    %v75 = vcombine.high %v74, %v74
    %vm78 = vcmask 1041408
    %v79 = vsel %vm78, %v74, 0.0
    %v80 = vsel %vm78, %v75, 0.0
    %v81 = vadd.f32 %v79, %v80
    %82 = vadd.xlane.f32.xlu0 %v81
    %v83 = vpop.xlane.xlu0 %82
    %v84 = vadd.f32 %v66, %v83
    %vm85 = vcmask 1024
    %86 = vst.msk [vmem:[#allocation2] sm:$0x3] %vm85, %v84
    %v89 = vunpack.c.l.s4 1983009808
    %v90 = vunpack.c.0.s8 %v89
    %v91 = vlaneseq
    %v92 = vshrl.u32 %v91, 7
    %v93 = vsub.s32 %v90, %v92
    %v94 = vrot.slane %v53, %v93
    %v95 = vcombine.high %v94, %v94
    %v98 = vsel %vm78, %v94, 0.0
    %v99 = vsel %vm78, %v95, 0.0
    %v100 = vadd.f32 %v98, %v99
    %101 = vadd.xlane.f32.xlu0 %v100
    %v102 = vpop.xlane.xlu0 %101
    %v105 = vunpack.c.l.s4 1983009808
    %v106 = vunpack.c.0.s8 %v105
    %v107 = vlaneseq
    %v108 = vshrl.u32 %v107, 7
    %v109 = vsub.s32 %v106, %v108
    %v110 = vrot.slane %v54, %v109
    %v111 = vcombine.high %v110, %v110
    %v114 = vsel %vm78, %v110, 0.0
    %v115 = vsel %vm78, %v111, 0.0
    %v116 = vadd.f32 %v114, %v115
    %117 = vadd.xlane.f32.xlu0 %v116
    %v118 = vpop.xlane.xlu0 %117
    %v119 = vadd.f32 %v102, 1e-10
    %v120 = vmul.f32 %v119, 1e-10
    %v123 = vunpack.c.l.s4 269488144
    %v124 = vunpack.c.0.s8 %v123
    %v125 = vlaneseq
    %v126 = vshrl.u32 %v125, 7
    %v127 = vsub.s32 %v124, %v126
    %v128 = vrot.slane %v120, %v127
    %v130 = vadd.f32 %v53, %v128
    %v131 = vlog2.pop %v130
    %v132 = vmul.f32 %v131, 0.6931472
    %v133 = vlog2.pop %v54
    %v134 = vmul.f32 %v133, 0.6931472
    %vm135 = vcmp.gt.f32.partialorder %v54, 0.0
    %v136 = vsub.f32 %v134, %v132
    %v137 = vmul.f32 %v54, %v136
    %v138 = vsel %vm135, %v137, 0.0
    %v141 = vunpack.c.l.s4 1983009808
    %v142 = vunpack.c.0.s8 %v141
    %v143 = vlaneseq
    %v144 = vshrl.u32 %v143, 7
    %v145 = vsub.s32 %v142, %v144
    %v146 = vrot.slane %v138, %v145
    %v147 = vcombine.high %v146, %v146
    %v150 = vsel %vm78, %v146, 0.0
    %v151 = vsel %vm78, %v147, 0.0
    %v152 = vadd.f32 %v150, %v151
    %153 = vadd.xlane.f32.xlu0 %v152
    %v154 = vpop.xlane.xlu0 %153
    %v155 = vlog2.pop %v119
    %v156 = vmul.f32 %v155, 0.6931472
    %v157 = vadd.f32 %v118, 1e-10
    %v158 = vlog2.pop %v157
    %v159 = vmul.f32 %v158, 0.6931472
    %v160 = vsub.f32 %v156, %v159
    %v161 = vmul.f32 %v118, %v160
    %v162 = vadd.f32 %v154, %v161
    %v163 = vld [vmem:[#allocation3] sm:$0x3]
    %v164 = vrcp.pop %v157
    %v165 = vmul.f32 %v162, %v164
    %v166 = vadd.f32 %v163, %v165
    %167 = vst.msk [vmem:[#allocation3] sm:$0x3] %vm85, %v166
    // Predicated region
    $region22: #{tpu_custom_call.1} parent=1 // pred_check
      %p168 = pneg %p46
    $region23: #{tpu_custom_call.1} parent=1 // pred_check_branch
      %170 = sbr.rel (%p168) target = $region25
    $region24: #{tpu_custom_call.1} parent=1 // pred_region
      %v171 = vld [vmem:[#allocation2] sm:$0x3]
      %v172 = vsel %vm85, %v171, 0.0
      %173 = vadd.xlane.f32.xlu0 %v172
      %v174 = vpop.xlane.xlu0 %173
      %v175 = vrot.slane %v174, 4
      %v176 = vadd.f32 %v174, %v175
      %v177 = vrot.slane %v176, 2
      %v178 = vadd.f32 %v176, %v177
      %v179 = vrot.slane %v178, 1
      %v180 = vadd.f32 %v178, %v179
      %s181 = vtos %v180
      %s182 = smul.f32 %s181, 0.001953125
      %s183 = sadd.f32 %s182, 0.0
      %v184 = vld [vmem:[#allocation3] sm:$0x3]
      %v185 = vsel %vm85, %v184, 0.0
      %186 = vadd.xlane.f32.xlu0 %v185
      %v187 = vpop.xlane.xlu0 %186
      %v188 = vrot.slane %v187, 4
      %v189 = vadd.f32 %v187, %v188
      %v190 = vrot.slane %v189, 2
      %v191 = vadd.f32 %v189, %v190
      %v192 = vrot.slane %v191, 1
      %v193 = vadd.f32 %v191, %v192
      %s194 = vtos %v193
      %s195 = smul.f32 %s194, 0.05
      %s196 = sadd.f32 %s183, %s195
      %v197 = vstv %s196
      %198 = vst [vmem:[#allocation9] sm:$0xff] %v197
    $region25: #{tpu_custom_call.1} parent=1 // pred_fallthru
      _
    // Predicated region
    $region26: #{tpu_custom_call.1} parent=1 // pred_check
      _
    $region27: #{tpu_custom_call.1} parent=1 // pred_check_branch
      %200 = sbr.rel (0) target = $region29
    $region28: #{tpu_custom_call.1} parent=1 // pred_region
      %s202 = ssub.s32 128, 128
      %203 = vsyncadd [#allocation6], %s202
      %s205 = sshll.u32 [#allocation9], 4
      %s206 = int_to_ptr.vmem [resolvable:$true] %s205
      %208 = dma.vmem_to_hbm [thread:$0]  %s206, 128, %s2, [#allocation6]
    $region29: #{tpu_custom_call.1} parent=1 // pred_fallthru
      _
    // Predicated region
    $region30: #{tpu_custom_call.1} parent=1 // pred_check
      _
    $region31: #{tpu_custom_call.1} parent=1 // pred_check_branch
      %210 = sbr.rel (0) target = $region33
    $region32: #{tpu_custom_call.1} parent=1 // pred_region
      %211 = dma.done [#allocation6], 128
    $region33: #{tpu_custom_call.1} parent=1 // pred_fallthru
      _
    %212 = vsyncpa [#allocation5], 1
    %213 = vsyncpa [#allocation8], 1
    %214 = vsyncpa [#allocation6], 1

</llo_original>
